<compile_context>
chip_gen: v5e
topology: v5e:2x2
jax: 0.10.0
libtpu: 0.0.40
codegen_flags: <defaults>
</compile_context>

<pallas_src>
import functools

import jax
import jax.numpy as jnp
from jax import lax
from jax.experimental import pallas as pl
from jax.experimental.pallas import tpu as pltpu

# ----------------------------- problem sizes ------------------------------
B, S = 2, 8            # batch, sequence
I_SIZE = 64            # transformer intermediate size (dense input)
H_SIZE = 32            # transformer hidden size (dense output / adapter / LN)
LORA_RANK = 8          # rank of the 'lora' adapter op (SearchCell op)
LN_EPS = 1e-12
TM_MAX = 512           # max rows (tokens) per grid step


def _round_up(x, m):
    return (x + m - 1) // m * m


# ------------------------------- kernel -----------------------------------
def nas_bert_ff_kernel(x_ref,        # [TM, I]   hidden_states tile
                       inp_ref,      # [TM, H]   residual input tile
                       w_ref,        # [I, H]    effective dense weight (adapter folded in)
                       b_ref,        # [1, H]    effective dense bias   (adapter folded in)
                       g_ref,        # [1, H]    LayerNorm gamma
                       beta_ref,     # [1, H]    LayerNorm beta
                       o_ref):       # [TM, H]
    # dense (+ folded adapter) on the MXU, f32 accumulation
    h = jnp.dot(x_ref[...], w_ref[...], preferred_element_type=jnp.float32)
    y = h + b_ref[...] + inp_ref[...]

    # LayerNorm, single-pass reductions: mean and E[y^2] together.
    mean = jnp.mean(y, axis=-1, keepdims=True)
    mean_sq = jnp.mean(y * y, axis=-1, keepdims=True)
    var = jnp.maximum(mean_sq - mean * mean, 0.0)   # clamp for numerical safety
    norm = (y - mean) * lax.rsqrt(var + LN_EPS)
    o_ref[...] = (norm * g_ref[...] + beta_ref[...]).astype(o_ref.dtype)


# ------------------------------- wrapper -----------------------------------
@functools.partial(jax.jit, static_argnames=())
def nas_bert_ff(hidden_states, input_tensor, params, hardwts, index):
    """hidden_states: [B,S,I], input_tensor: [B,S,H] -> [B,S,H]."""
    Bq, Sq, Iq = hidden_states.shape
    Hq = input_tensor.shape[-1]
    M = Bq * Sq
    x = hidden_states.reshape(M, Iq).astype(jnp.float32)
    inp = input_tensor.reshape(M, Hq).astype(jnp.float32)

    # ---- fold NASAdapter (GDAS forward + residual) into the dense layer ----
    # GDAS select:  idx==1 -> cell = w1*lora(h) + w0 ; idx==0 -> cell = w0*0 + w1
    # adapter out (residual=True) = cell + h
    #   idx==1:  h @ (I + w1 * A@B) + w0
    #   idx==0:  h + w1
    # Exact for arbitrary (w0, w1), so semantics are preserved even for soft weights.
    w0 = hardwts[0]
    w1 = hardwts[1]
    sel = (index[0] == 1).astype(jnp.float32)
    ab = jnp.dot(params["lora_a"], params["lora_b"])                 # [H, H]
    mix = jnp.eye(Hq, dtype=jnp.float32) + (sel * w1) * ab           # I (+ w1*AB if 'lora')
    w_eff = jnp.dot(params["w_dense"], mix)                          # [I, H]
    b_eff = jnp.dot(params["b_dense"], mix) + jnp.where(index[0] == 1, w0, w1)

    # ---- row tiling: single grid step at toy sizes, tail-safe padding ----
    TM = min(TM_MAX, _round_up(M, 8))
    M_pad = _round_up(M, TM)
    if M_pad != M:
        x = jnp.pad(x, ((0, M_pad - M), (0, 0)))
        inp = jnp.pad(inp, ((0, M_pad - M), (0, 0)))
    grid = (M_pad // TM,)

    flops = 2 * M_pad * Iq * Hq + 10 * M_pad * Hq
    bytes_accessed = 4 * (M_pad * Iq + 2 * M_pad * Hq + Iq * Hq + 4 * Hq)

    out = pl.pallas_call(
        nas_bert_ff_kernel,
        out_shape=jax.ShapeDtypeStruct((M_pad, Hq), jnp.float32),
        grid=grid,
        in_specs=[
            pl.BlockSpec((TM, Iq), lambda i: (i, 0)),   # x
            pl.BlockSpec((TM, Hq), lambda i: (i, 0)),   # input_tensor (residual)
            pl.BlockSpec((Iq, Hq), lambda i: (0, 0)),   # W_eff
            pl.BlockSpec((1, Hq), lambda i: (0, 0)),    # b_eff
            pl.BlockSpec((1, Hq), lambda i: (0, 0)),    # LN gamma
            pl.BlockSpec((1, Hq), lambda i: (0, 0)),    # LN beta
        ],
        out_specs=pl.BlockSpec((TM, Hq), lambda i: (i, 0)),
        compiler_params=pltpu.CompilerParams(
            dimension_semantics=("parallel",)),          # rows are independent (v7x 2-TC)
        cost_estimate=pl.CostEstimate(
            flops=flops, transcendentals=M_pad, bytes_accessed=bytes_accessed),
    )(x, inp, w_eff, b_eff, params["ln_gamma"], params["ln_beta"])

    return out[:M].reshape(Bq, Sq, Hq)


# --------------------- NASAdapter Gumbel selection (glue) -------------------
def get_gumbel_prob(arch_params, key, tau=0.5):
    # gumbels = -log(Exp(1)) == standard Gumbel noise (randomness stays in JAX)
    gumbels = -jnp.log(jax.random.exponential(key, arch_params.shape))
    logits = (jax.nn.log_softmax(arch_params, axis=1) + gumbels) / tau
    probs = jax.nn.softmax(logits, axis=1)
    index = jnp.argmax(probs, axis=-1).astype(jnp.int32)          # [num_edges]
    one_h = jax.nn.one_hot(index, arch_params.shape[1], dtype=jnp.float32)
    # straight-through: forward value of (one_h - probs.detach() + probs) == one_h
    hardwts = one_h
    # TODO(synk): PyTorch retries on inf/nan gumbels; skipped (deterministic key).
    return hardwts, index


# --------------------------------- main -------------------------------------
if __name__ == "__main__":
    key = jax.random.PRNGKey(0)
    ks = jax.random.split(key, 10)

    # deterministic parameter init (synthetic weights, matching module shapes)
    params = {
        "w_dense": 0.05 * jax.random.normal(ks[0], (I_SIZE, H_SIZE), jnp.float32),
        "b_dense": 0.05 * jax.random.normal(ks[1], (1, H_SIZE), jnp.float32),
        # TODO(synk): SearchCell 'lora' op definition not provided upstream;
        # assumed rank-8 bottleneck (H -> r -> H) without bias/activation.
        "lora_a": 0.05 * jax.random.normal(ks[2], (H_SIZE, LORA_RANK), jnp.float32),
        "lora_b": 0.05 * jax.random.normal(ks[3], (LORA_RANK, H_SIZE), jnp.float32),
        "ln_gamma": jnp.ones((1, H_SIZE), jnp.float32),
        "ln_beta": jnp.zeros((1, H_SIZE), jnp.float32),
    }
    # arch_parameters: 0.001 * randn(num_edges=1, num_ops=2)
    arch_parameters = 0.001 * jax.random.normal(ks[4], (1, 2), jnp.float32)
    hardwts_e, index_e = get_gumbel_prob(arch_parameters, ks[5])
    hardwts = hardwts_e[0]                     # single edge -> [2]
    index = index_e                            # [1] int32

    hidden_states = jax.random.normal(ks[6], (B, S, I_SIZE), jnp.float32)
    input_tensor = jax.random.normal(ks[7], (B, S, H_SIZE), jnp.float32)

    out = nas_bert_ff(hidden_states, input_tensor, params, hardwts, index)
    out = jax.block_until_ready(out)

    # pure-JAX reference in the ORIGINAL (un-folded) formulation
    def ref_forward(hs, it):
        h = hs.reshape(-1, I_SIZE) @ params["w_dense"] + params["b_dense"]
        lora = (h @ params["lora_a"]) @ params["lora_b"]
        w0, w1 = hardwts[0], hardwts[1]
        cell = jnp.where(index[0] == 1, w1 * lora + w0,
                         w0 * jnp.zeros_like(lora) + w1)
        h = cell + h
        y = h + it.reshape(-1, H_SIZE)
        mu = y.mean(-1, keepdims=True)
        var = ((y - mu) ** 2).mean(-1, keepdims=True)
        yn = (y - mu) / jnp.sqrt(var + LN_EPS)
        return (yn * params["ln_gamma"] + params["ln_beta"]).reshape(B, S, H_SIZE)

    ref = ref_forward(hidden_states, input_tensor)
    assert jnp.allclose(out, ref, atol=1e-5, rtol=1e-5), "mismatch vs reference"
    print("KERNEL_OK")
</pallas_src>

<mosaic_0001>
module attributes {stable_mosaic.version = 11 : i64} {
  func.func @nas_bert_ff_kernel(%arg0: i32, %arg1: memref<16x64xf32, #tpu.memory_space<vmem>>, %arg2: memref<16x32xf32, #tpu.memory_space<vmem>>, %arg3: memref<64x32xf32, #tpu.memory_space<vmem>>, %arg4: memref<1x32xf32, #tpu.memory_space<vmem>>, %arg5: memref<1x32xf32, #tpu.memory_space<vmem>>, %arg6: memref<1x32xf32, #tpu.memory_space<vmem>>, %arg7: memref<16x32xf32, #tpu.memory_space<vmem>>) attributes {dimension_semantics = [#tpu.dimension_semantics<parallel>], iteration_bounds = array<i64: 1>, scalar_prefetch = 0 : i64, scratch_operands = 0 : i64, tpu.core_type = #tpu.core_type<tc>, window_params = [{transform_indices = @transform_0, window_bounds = array<i64: 16, 64>}, {transform_indices = @transform_1, window_bounds = array<i64: 16, 32>}, {pipeline_mode = #tpu.pipeline_mode<synchronous>, transform_indices = @transform_2, window_bounds = array<i64: 64, 32>}, {pipeline_mode = #tpu.pipeline_mode<synchronous>, transform_indices = @transform_3, window_bounds = array<i64: 1, 32>}, {pipeline_mode = #tpu.pipeline_mode<synchronous>, transform_indices = @transform_4, window_bounds = array<i64: 1, 32>}, {pipeline_mode = #tpu.pipeline_mode<synchronous>, transform_indices = @transform_5, window_bounds = array<i64: 1, 32>}, {transform_indices = @transform_6, window_bounds = array<i64: 16, 32>}]} {
    %c0 = arith.constant 0 : index
    %c0_0 = arith.constant 0 : index
    %0 = vector.load %arg1[%c0, %c0_0] : memref<16x64xf32, #tpu.memory_space<vmem>>, vector<16x64xf32>
    %c0_1 = arith.constant 0 : index
    %c0_2 = arith.constant 0 : index
    %1 = vector.load %arg3[%c0_1, %c0_2] : memref<64x32xf32, #tpu.memory_space<vmem>>, vector<64x32xf32>
    %cst = arith.constant dense<0.000000e+00> : vector<16x32xf32>
    %2 = tpu.matmul %0, %1, %cst {dimension_numbers = #tpu.dot_dimension_numbers<[1], [0], [0], [1], [0, 0, 1, 1], [], []>} : vector<16x64xf32>, vector<64x32xf32>, vector<16x32xf32> -> vector<16x32xf32>
    %c0_3 = arith.constant 0 : index
    %c0_4 = arith.constant 0 : index
    %3 = vector.load %arg4[%c0_3, %c0_4] : memref<1x32xf32, #tpu.memory_space<vmem>>, vector<1x32xf32>
    %4 = vector.broadcast %3 : vector<1x32xf32> to vector<16x32xf32>
    %5 = arith.addf %2, %4 : vector<16x32xf32>
    %c0_5 = arith.constant 0 : index
    %c0_6 = arith.constant 0 : index
    %6 = vector.load %arg2[%c0_5, %c0_6] : memref<16x32xf32, #tpu.memory_space<vmem>>, vector<16x32xf32>
    %7 = arith.addf %5, %6 : vector<16x32xf32>
    %cst_7 = arith.constant dense<0.000000e+00> : vector<16xf32>
    %8 = vector.multi_reduction <add>, %7, %cst_7 [1] : vector<16x32xf32> to vector<16xf32>
    %9 = vector.shape_cast %8 : vector<16xf32> to vector<16x1xf32>
    %cst_8 = arith.constant 3.200000e+01 : f32
    %10 = vector.broadcast %cst_8 : f32 to vector<16x1xf32>
    %11 = arith.divf %9, %10 : vector<16x1xf32>
    %12 = arith.mulf %7, %7 : vector<16x32xf32>
    %cst_9 = arith.constant dense<0.000000e+00> : vector<16xf32>
    %13 = vector.multi_reduction <add>, %12, %cst_9 [1] : vector<16x32xf32> to vector<16xf32>
    %14 = vector.shape_cast %13 : vector<16xf32> to vector<16x1xf32>
    %cst_10 = arith.constant 3.200000e+01 : f32
    %15 = vector.broadcast %cst_10 : f32 to vector<16x1xf32>
    %16 = arith.divf %14, %15 : vector<16x1xf32>
    %17 = arith.mulf %11, %11 : vector<16x1xf32>
    %18 = arith.subf %16, %17 : vector<16x1xf32>
    %cst_11 = arith.constant 0.000000e+00 : f32
    %19 = vector.broadcast %cst_11 : f32 to vector<16x1xf32>
    %20 = arith.maximumf %18, %19 : vector<16x1xf32>
    %21 = vector.broadcast %11 : vector<16x1xf32> to vector<16x32xf32>
    %22 = arith.subf %7, %21 : vector<16x32xf32>
    %cst_12 = arith.constant 9.99999996E-13 : f32
    %23 = vector.broadcast %cst_12 : f32 to vector<16x1xf32>
    %24 = arith.addf %20, %23 : vector<16x1xf32>
    %25 = math.rsqrt %24 : vector<16x1xf32>
    %26 = vector.broadcast %25 : vector<16x1xf32> to vector<16x32xf32>
    %27 = arith.mulf %22, %26 : vector<16x32xf32>
    %c0_13 = arith.constant 0 : index
    %c0_14 = arith.constant 0 : index
    %28 = vector.load %arg5[%c0_13, %c0_14] : memref<1x32xf32, #tpu.memory_space<vmem>>, vector<1x32xf32>
    %29 = vector.broadcast %28 : vector<1x32xf32> to vector<16x32xf32>
    %30 = arith.mulf %27, %29 : vector<16x32xf32>
    %c0_15 = arith.constant 0 : index
    %c0_16 = arith.constant 0 : index
    %31 = vector.load %arg6[%c0_15, %c0_16] : memref<1x32xf32, #tpu.memory_space<vmem>>, vector<1x32xf32>
    %32 = vector.broadcast %31 : vector<1x32xf32> to vector<16x32xf32>
    %33 = arith.addf %30, %32 : vector<16x32xf32>
    %c0_17 = arith.constant 0 : index
    %c0_18 = arith.constant 0 : index
    %34 = vector.load %arg7[%c0_17, %c0_18] : memref<16x32xf32, #tpu.memory_space<vmem>>, vector<16x32xf32>
    tpu.vector_store %arg7[%c0_17, %c0_18], %33 {strides = array<i32>} : memref<16x32xf32, #tpu.memory_space<vmem>>, vector<16x32xf32>,
    return
  }
  func.func @transform_0(%arg0: i32) -> (i32, i32) {
    %c0_i32 = arith.constant 0 : i32
    %c0_i32_0 = arith.constant 0 : i32
    return %arg0, %c0_i32 : i32, i32
  }
  func.func @transform_1(%arg0: i32) -> (i32, i32) {
    %c0_i32 = arith.constant 0 : i32
    %c0_i32_0 = arith.constant 0 : i32
    return %arg0, %c0_i32 : i32, i32
  }
  func.func @transform_2(%arg0: i32) -> (i32, i32) {
    %c0_i32 = arith.constant 0 : i32
    %c0_i32_0 = arith.constant 0 : i32
    %c0_i32_1 = arith.constant 0 : i32
    return %c0_i32, %c0_i32_0 : i32, i32
  }
  func.func @transform_3(%arg0: i32) -> (i32, i32) {
    %c0_i32 = arith.constant 0 : i32
    %c0_i32_0 = arith.constant 0 : i32
    %c0_i32_1 = arith.constant 0 : i32
    return %c0_i32, %c0_i32_0 : i32, i32
  }
  func.func @transform_4(%arg0: i32) -> (i32, i32) {
    %c0_i32 = arith.constant 0 : i32
    %c0_i32_0 = arith.constant 0 : i32
    %c0_i32_1 = arith.constant 0 : i32
    return %c0_i32, %c0_i32_0 : i32, i32
  }
  func.func @transform_5(%arg0: i32) -> (i32, i32) {
    %c0_i32 = arith.constant 0 : i32
    %c0_i32_0 = arith.constant 0 : i32
    %c0_i32_1 = arith.constant 0 : i32
    return %c0_i32, %c0_i32_0 : i32, i32
  }
  func.func @transform_6(%arg0: i32) -> (i32, i32) {
    %c0_i32 = arith.constant 0 : i32
    %c0_i32_0 = arith.constant 0 : i32
    return %arg0, %c0_i32 : i32, i32
  }
}

</mosaic_0001>

<llo_original>
// kernel: nas_bert_ff.1
$region0: #{nas_bert_ff.1}
  #allocation0 [shape = 'u32[]', space=smem, size = 0x4, offset = 0x4, fixed_abs, tag = 'smem constant byte address 0x4 - core index']
  #allocation1 [shape = 'u32[72,128]{1,0:T(1,128)}', space=vmem, size = 0x9000, scoped, tag = 'internal scratch']
  %s0 = inlined_call_operand.vmem [shape: f32[16,64], index: 0, kind: input, shape index: {}]
  %s1 = inlined_call_operand.vmem [shape: f32[16,32], index: 1, kind: input, shape index: {}]
  %s2 = inlined_call_operand.vmem [shape: f32[64,32], index: 2, kind: input, shape index: {}]
  %s3 = inlined_call_operand.vmem [shape: f32[1,32], index: 3, kind: input, shape index: {}]
  %s4 = inlined_call_operand.vmem [shape: f32[1,32], index: 4, kind: input, shape index: {}]
  %s5 = inlined_call_operand.vmem [shape: f32[1,32], index: 5, kind: input, shape index: {}]
  %s6 = inlined_call_operand.hbm [shape: f32[16,32], index: 6, kind: output, shape index: {}]
  %s7 = sld [smem:[#allocation0]]
  $region34: #{nas_bert_ff.1} parent=0
    _
  %s9 = ssub.s32 1, %s7
  %s10 = scalar_select 0, %s9, %s7
  $region1: #{nas_bert_ff.1} parent=0
    #allocation2 [shape = 'u8[8192]{0}', space=vmem, size = 0x2000, scoped, tag = 'output window, operand 0, single buffered']
    #allocation3 [shape = 's32[1]{0}', space=sflag, size = 0x4, scoped, tag = 'scoped memory for nas_bert_ff.1']
    %11 = vsyncpa [#allocation3], 0
    // Predicated region
    $region2: #{nas_bert_ff.1} parent=1 // pred_check
      _
    $region3: #{nas_bert_ff.1} parent=1 // pred_check_branch
      %13 = sbr.rel (0) target = $region5
    $region4: #{nas_bert_ff.1} parent=1 // pred_region
      _
    $region5: #{nas_bert_ff.1} parent=1 // pred_fallthru
      _
    // Predicated region
    $region6: #{nas_bert_ff.1} parent=1 // pred_check
      _
    $region7: #{nas_bert_ff.1} parent=1 // pred_check_branch
      %15 = sbr.rel (0) target = $region9
    $region8: #{nas_bert_ff.1} parent=1 // pred_region
      _
    $region9: #{nas_bert_ff.1} parent=1 // pred_fallthru
      _
    // Predicated region
    $region10: #{nas_bert_ff.1} parent=1 // pred_check
      _
    $region11: #{nas_bert_ff.1} parent=1 // pred_check_branch
      %17 = sbr.rel (0) target = $region13
    $region12: #{nas_bert_ff.1} parent=1 // pred_region
      _
    $region13: #{nas_bert_ff.1} parent=1 // pred_fallthru
      _
    // Predicated region
    $region14: #{nas_bert_ff.1} parent=1 // pred_check
      _
    $region15: #{nas_bert_ff.1} parent=1 // pred_check_branch
      %19 = sbr.rel (0) target = $region17
    $region16: #{nas_bert_ff.1} parent=1 // pred_region
      _
    $region17: #{nas_bert_ff.1} parent=1 // pred_fallthru
      _
    // Predicated region
    $region18: #{nas_bert_ff.1} parent=1 // pred_check
      _
    $region19: #{nas_bert_ff.1} parent=1 // pred_check_branch
      %21 = sbr.rel (0) target = $region21
    $region20: #{nas_bert_ff.1} parent=1 // pred_region
      _
    $region21: #{nas_bert_ff.1} parent=1 // pred_fallthru
      _
    // Predicated region
    $region22: #{nas_bert_ff.1} parent=1 // pred_check
      _
    $region23: #{nas_bert_ff.1} parent=1 // pred_check_branch
      %23 = sbr.rel (0) target = $region25
    $region24: #{nas_bert_ff.1} parent=1 // pred_region
      _
    $region25: #{nas_bert_ff.1} parent=1 // pred_fallthru
      _
    %v24 = vld [vmem:[%s0] sm:$0xff]
    %v25 = vld [vmem:[%s0 + $0x8] sm:$0xff]
    %v26 = vld [vmem:[%s2] sm:$0xff]
    %v27 = vld [vmem:[%s2 + $0x8] sm:$0xff]
    %v28 = vld [vmem:[%s2 + $0x10] sm:$0xff]
    %v29 = vld [vmem:[%s2 + $0x18] sm:$0xff]
    %v30 = vld [vmem:[%s2 + $0x20] sm:$0xff]
    %v31 = vld [vmem:[%s2 + $0x28] sm:$0xff]
    %v32 = vld [vmem:[%s2 + $0x30] sm:$0xff]
    %v33 = vld [vmem:[%s2 + $0x38] sm:$0xff]
    %v34 = vld [vmem:[%s3] sm:$0x1]
    %v36 = vperm.slane %v34, 0
    %vm38 = vcmask 523264
    %v40 = vsel %vm38, %v24, 0
    %v43 = vsel %vm38, %v25, 0
    %45 = vmatpush.msra.mxu0 0.0
    %46 = vmatpush.msra.mxu0 0.0
    %47 = vmatpush.msra.mxu0 0.0
    %48 = vmatpush.msra.mxu0 0.0
    %49 = vmatpush.msra.mxu0 0.0
    %50 = vmatpush.msra.mxu0 0.0
    %51 = vmatpush.msra.mxu0 0.0
    %52 = vmatpush.msra.mxu0 0.0
    %53 = vmatpush.msra.mxu0 %v33
    %54 = vmatpush.msra.mxu0 %v32
    %55 = vmatpush.msra.mxu0 %v31
    %56 = vmatpush.msra.mxu0 %v30
    %57 = vmatpush.msra.mxu0 %v29
    %58 = vmatpush.msra.mxu0 %v28
    %59 = vmatpush.msra.mxu0 %v27
    %60 = vmatpush.msra.mxu0 %v26
    %61 = vmatmul.f32.gmra.mxu0 %v40
    %v62 = vpop.f32.mrf.mxu0
    %v63 = vadd.f32 %v36, %v62
    %64 = vmatmul.f32.gmra.mxu0 %v43
    %v65 = vpop.f32.mrf.mxu0
    %v66 = vadd.f32 %v36, %v65
    %67 = vdwg.mxu0
    %v68 = vld [vmem:[%s1] sm:$0xff]
    %v69 = vld [vmem:[%s1 + $0x8] sm:$0xff]
    %v70 = vadd.f32 %v63, %v68
    %v71 = vadd.f32 %v66, %v69
    %vm72 = vcmask 261120
    %v73 = vsel %vm72, %v70, 0.0
    %74 = vadd.xlane.f32.xlu0 %v73
    %v75 = vpop.xlane.xlu0 %74
    %v76 = vsel %vm72, %v71, 0.0
    %77 = vadd.xlane.f32.xlu0 %v76
    %v78 = vpop.xlane.xlu0 %77
    %v79 = vrcp.pop 32.0
    %v80 = vmul.f32 32.0, %v79
    %v81 = vsub.f32 1.0, %v80
    %v82 = vmul.f32 %v79, %v81
    %v83 = vadd.f32 %v79, %v82
    %vm84 = vweird.f32 %v79
    %v85 = vsel %vm84, %v79, %v83
    %v86 = vmul.f32 %v75, %v85
    %v87 = vmul.f32 %v78, %v85
    %v88 = vmul.f32 %v70, %v70
    %v89 = vmul.f32 %v71, %v71
    %v90 = vsel %vm72, %v88, 0.0
    %91 = vadd.xlane.f32.xlu0 %v90
    %v92 = vpop.xlane.xlu0 %91
    %v93 = vsel %vm72, %v89, 0.0
    %94 = vadd.xlane.f32.xlu0 %v93
    %v95 = vpop.xlane.xlu0 %94
    %v96 = vmul.f32 %v92, %v85
    %v97 = vmul.f32 %v95, %v85
    %v98 = vmul.f32 %v86, %v86
    %v99 = vmul.f32 %v87, %v87
    %v100 = vsub.f32 %v96, %v98
    %v101 = vsub.f32 %v97, %v99
    %v102 = vmax.f32 %v100, 0.0
    %v103 = vmax.f32 %v101, 0.0
    %v104 = vsub.f32 %v70, %v86
    %v105 = vsub.f32 %v71, %v87
    %v106 = vadd.f32 %v102, 1e-12
    %v107 = vadd.f32 %v103, 1e-12
    %v108 = vrsqrt.pop %v106
    %v109 = vmul.f32 %v108, %v106
    %v110 = vmul.f32 %v109, %v108
    %v111 = vmul.f32 0.5, %v110
    %v112 = vsub.f32 1.5, %v111
    %v113 = vmul.f32 %v108, %v112
    %vm114 = vweird.f32 %v106
    %vm115 = vweird.f32 %v108
    %vm116 = vmor %vm114, %vm115
    %v117 = vsel %vm116, %v108, %v113
    %v118 = vrsqrt.pop %v107
    %v119 = vmul.f32 %v118, %v107
    %v120 = vmul.f32 %v119, %v118
    %v121 = vmul.f32 0.5, %v120
    %v122 = vsub.f32 1.5, %v121
    %v123 = vmul.f32 %v118, %v122
    %vm124 = vweird.f32 %v107
    %vm125 = vweird.f32 %v118
    %vm126 = vmor %vm124, %vm125
    %v127 = vsel %vm126, %v118, %v123
    %v128 = vmul.f32 %v104, %v117
    %v129 = vmul.f32 %v105, %v127
    %v130 = vld [vmem:[%s4] sm:$0x1]
    %v132 = vperm.slane %v130, 0
    %v134 = vmul.f32 %v128, %v132
    %v135 = vmul.f32 %v129, %v132
    %v136 = vld [vmem:[%s5] sm:$0x1]
    %v138 = vperm.slane %v136, 0
    %v140 = vadd.f32 %v134, %v138
    %v141 = vadd.f32 %v135, %v138
    %142 = vst.msk [vmem:[#allocation2] sm:$0xff] %vm72, %v140
    %143 = vst.msk [vmem:[#allocation2 + $0x8] sm:$0xff] %vm72, %v141
    // Predicated region
    $region26: #{nas_bert_ff.1} parent=1 // pred_check
      _
    $region27: #{nas_bert_ff.1} parent=1 // pred_check_branch
      %145 = sbr.rel (0) target = $region29
    $region28: #{nas_bert_ff.1} parent=1 // pred_region
      %147 = vsyncadd [#allocation3], 0
      %s148 = sshll.u32 [#allocation2], 4
      %s149 = int_to_ptr.vmem [resolvable:$true] %s148
      %s150 = sshll.u32 %s6, 4
      %s151 = int_to_ptr.hbm [resolvable:$true] %s150
      %156 = dma.vmem_to_hbm [thread:$0]  %s149, 256, %s151, [#allocation3], 128, 128, 8
    $region29: #{nas_bert_ff.1} parent=1 // pred_fallthru
      _
    // Predicated region
    $region30: #{nas_bert_ff.1} parent=1 // pred_check
      _
    $region31: #{nas_bert_ff.1} parent=1 // pred_check_branch
      %158 = sbr.rel (0) target = $region33
    $region32: #{nas_bert_ff.1} parent=1 // pred_region
      %160 = dma.done [#allocation3], 256
    $region33: #{nas_bert_ff.1} parent=1 // pred_fallthru
      _
    %161 = vsyncpa [#allocation3], 1

</llo_original>
